<compile_context>
chip_gen: v6e
topology: v6e:2x2x1
jax: 0.10.0
libtpu: 0.0.40
codegen_flags: <defaults>
</compile_context>

<pallas_src>
import functools

import jax
import jax.numpy as jnp
from jax.experimental import pallas as pl
from jax.experimental.pallas import tpu as pltpu

LANES = 128
SUBLANES = 8
_BLOCK_BYTES_BUDGET = 4 << 20  # ~4 MiB input blocks; safe on v5e/v6e/v7x


def _channel_sum_kernel(x_ref, out_ref, acc_ref, *, c, rows_tile, acc_rows,
                        total_rows, grid_cols, need_row_mask):
    # grid = (batch, column-tiles); the column-tile axis is the reduction axis.
    j = pl.program_id(1)
    last = grid_cols - 1  # static

    @pl.when(j == 0)
    def _init():
        acc_ref[...] = jnp.zeros_like(acc_ref)

    def _accumulate(x):
        # x: (1, C, rows_tile, 128) f32
        if rows_tile == acc_rows:
            acc_ref[...] += x
        else:
            groups = rows_tile // acc_rows
            # Layout-preserving split of the sublane dim; sum over the group
            # axis is pure vreg adds (no XLU), single small store into acc.
            acc_ref[...] += jnp.sum(
                x.reshape(1, c, groups, acc_rows, LANES), axis=2)

    x = x_ref[...].astype(jnp.float32)  # in-kernel upcast (free under DMA)

    if need_row_mask:
        # Static Python decision: only traced when the row tail can be ragged,
        # and the mask itself only runs on the last column tile.
        @pl.when(j != last)
        def _body():
            _accumulate(x)

        @pl.when(j == last)
        def _tail():
            row = jax.lax.broadcasted_iota(jnp.int32, x.shape, 2) + last * rows_tile
            _accumulate(jnp.where(row < total_rows, x, 0.0))
    else:
        _accumulate(x)

    @pl.when(j == last)
    def _finish():
        # Single tiny cross-lane + cross-sublane reduce per batch element.
        t = jnp.sum(acc_ref[...], axis=3, keepdims=True)      # (1, C, acc_rows, 1)
        out_ref[...] = jnp.sum(t, axis=2, keepdims=True)       # (1, C, 1, 1)


def _pick_rows_tile(total_rows, c, itemsize):
    bytes_per_row = c * LANES * itemsize
    budget_rows = max(SUBLANES,
                      (_BLOCK_BYTES_BUDGET // bytes_per_row) // SUBLANES * SUBLANES)
    if total_rows <= budget_rows:
        return total_rows          # single tile; full-extent dim is always legal
    return budget_rows             # multiple of 8; last tile may be ragged


def l_color(x):
    """Pallas equivalent of L_color.forward.  x: (B, 3, H, W) -> (B, 1, 1, 1)."""
    b, c, h, w = x.shape
    assert c == 3, "L_color expects 3 channels (RGB)"
    hw = h * w
    itemsize = jnp.dtype(x.dtype).itemsize

    total_rows = pl.cdiv(hw, LANES)
    x3 = x.reshape(b, c, hw)                      # contiguous -> free reshape
    if total_rows * LANES != hw:
        # Ragged lane tail: one small zero-pad copy (zeros don't affect the sum).
        x3 = jnp.pad(x3, ((0, 0), (0, 0), (0, total_rows * LANES - hw)))
    x4 = x3.reshape(b, c, total_rows, LANES)      # lane/sublane-dense layout

    rows_tile = _pick_rows_tile(total_rows, c, itemsize)
    grid_cols = pl.cdiv(total_rows, rows_tile)
    need_row_mask = (total_rows % rows_tile) != 0
    acc_rows = SUBLANES if rows_tile % SUBLANES == 0 else rows_tile

    block_bytes = c * rows_tile * LANES * itemsize

    kernel = functools.partial(
        _channel_sum_kernel, c=c, rows_tile=rows_tile, acc_rows=acc_rows,
        total_rows=total_rows, grid_cols=grid_cols, need_row_mask=need_row_mask)

    cost = pl.CostEstimate(
        flops=b * c * total_rows * LANES,
        transcendentals=0,
        bytes_accessed=b * c * total_rows * LANES * itemsize + b * c * 4)

    sums = pl.pallas_call(
        kernel,
        out_shape=jax.ShapeDtypeStruct((b, c, 1, 1), jnp.float32),
        grid_spec=pltpu.PrefetchScalarGridSpec(
            num_scalar_prefetch=0,
            grid=(b, grid_cols),
            in_specs=[pl.BlockSpec((1, c, rows_tile, LANES),
                                   lambda bi, j: (bi, 0, j, 0))],
            out_specs=pl.BlockSpec((1, c, 1, 1), lambda bi, j: (bi, 0, 0, 0)),
            scratch_shapes=[pltpu.VMEM((1, c, acc_rows, LANES), jnp.float32)],
        ),
        compiler_params=pltpu.CompilerParams(
            dimension_semantics=("parallel", "arbitrary"),
            vmem_limit_bytes=int(2 * block_bytes + (8 << 20)),
        ),
        cost_estimate=cost,
    )(x4)  # (B, C, 1, 1) f32 per-channel spatial sums

    # Tiny finishing math (3 scalars per batch) in plain jnp.
    mean = sums.reshape(b, c) / jnp.float32(hw)   # (B, 3)
    mr, mg, mb = mean[:, 0], mean[:, 1], mean[:, 2]
    drg = (mr - mg) ** 2
    drb = (mr - mb) ** 2
    dgb = (mb - mg) ** 2
    k = jnp.sqrt(drg * drg + drb * drb + dgb * dgb)
    return k.reshape(b, 1, 1, 1).astype(x.dtype)


def _reference(x):
    mean_rgb = jnp.mean(x, axis=(2, 3), keepdims=True)  # (B, 3, 1, 1)
    mr = mean_rgb[:, 0:1]
    mg = mean_rgb[:, 1:2]
    mb = mean_rgb[:, 2:3]
    drg = (mr - mg) ** 2
    drb = (mr - mb) ** 2
    dgb = (mb - mg) ** 2
    return jnp.sqrt(drg**2 + drb**2 + dgb**2)


if __name__ == "__main__":
    key = jax.random.PRNGKey(0)
    x = jax.random.uniform(key, (2, 3, 16, 16), dtype=jnp.float32)  # NCHW, c=3

    out = jax.block_until_ready(l_color(x))
    ref = jax.block_until_ready(_reference(x))

    assert out.shape == (2, 1, 1, 1), out.shape
    # k values are 4th powers of mean-differences (~1e-6), so compare with a
    # relative tolerance plus a tiny absolute floor.
    assert jnp.allclose(out, ref, rtol=1e-3, atol=1e-8), (out.ravel(), ref.ravel())
    print("KERNEL_OK")
</pallas_src>

<mosaic_0001>
module attributes {stable_mosaic.version = 11 : i64} {
  func.func @_channel_sum_kernel(%arg0: i32, %arg1: i32, %arg2: memref<1x3x2x128xf32, #tpu.memory_space<vmem>>, %arg3: memref<1x3x1x1xf32, #tpu.memory_space<vmem>>, %arg4: memref<1x3x2x128xf32, #tpu.memory_space<vmem>>) attributes {dimension_semantics = [#tpu.dimension_semantics<parallel>, #tpu.dimension_semantics<arbitrary>], iteration_bounds = array<i64: 2, 1>, scalar_prefetch = 0 : i64, scratch_operands = 1 : i64, tpu.core_type = #tpu.core_type<tc>, window_params = [{transform_indices = @transform_0, window_bounds = array<i64: 1, 3, 2, 128>}, {transform_indices = @transform_1, window_bounds = array<i64: 1, 3, 1, 1>}]} {
    %c0_i32 = arith.constant 0 : i32
    %0 = arith.cmpi eq, %arg1, %c0_i32 : i32
    %1 = arith.extui %0 : i1 to i32
    %c0_i32_0 = arith.constant 0 : i32
    %2 = arith.cmpi ne, %1, %c0_i32_0 : i32
    scf.if %2 {
      %cst = arith.constant 0.000000e+00 : f32
      %10 = vector.broadcast %cst : f32 to vector<1x3x2x128xf32>
      %c0_14 = arith.constant 0 : index
      %c0_15 = arith.constant 0 : index
      %c0_16 = arith.constant 0 : index
      %c0_17 = arith.constant 0 : index
      %11 = vector.load %arg4[%c0_14, %c0_15, %c0_16, %c0_17] : memref<1x3x2x128xf32, #tpu.memory_space<vmem>>, vector<1x3x2x128xf32>
      tpu.vector_store %arg4[%c0_14, %c0_15, %c0_16, %c0_17], %10 {strides = array<i32>} : memref<1x3x2x128xf32, #tpu.memory_space<vmem>>, vector<1x3x2x128xf32>,
    } else {
    }
    %c0 = arith.constant 0 : index
    %c0_1 = arith.constant 0 : index
    %c0_2 = arith.constant 0 : index
    %c0_3 = arith.constant 0 : index
    %3 = vector.load %arg2[%c0, %c0_1, %c0_2, %c0_3] : memref<1x3x2x128xf32, #tpu.memory_space<vmem>>, vector<1x3x2x128xf32>
    %c0_4 = arith.constant 0 : index
    %c0_5 = arith.constant 0 : index
    %c0_6 = arith.constant 0 : index
    %c0_7 = arith.constant 0 : index
    %4 = vector.load %arg4[%c0_4, %c0_5, %c0_6, %c0_7] : memref<1x3x2x128xf32, #tpu.memory_space<vmem>>, vector<1x3x2x128xf32>
    %5 = arith.addf %4, %3 : vector<1x3x2x128xf32>
    %c0_8 = arith.constant 0 : index
    %c0_9 = arith.constant 0 : index
    %c0_10 = arith.constant 0 : index
    %c0_11 = arith.constant 0 : index
    %6 = vector.load %arg4[%c0_8, %c0_9, %c0_10, %c0_11] : memref<1x3x2x128xf32, #tpu.memory_space<vmem>>, vector<1x3x2x128xf32>
    tpu.vector_store %arg4[%c0_8, %c0_9, %c0_10, %c0_11], %5 {strides = array<i32>} : memref<1x3x2x128xf32, #tpu.memory_space<vmem>>, vector<1x3x2x128xf32>,
    %c0_i32_12 = arith.constant 0 : i32
    %7 = arith.cmpi eq, %arg1, %c0_i32_12 : i32
    %8 = arith.extui %7 : i1 to i32
    %c0_i32_13 = arith.constant 0 : i32
    %9 = arith.cmpi ne, %8, %c0_i32_13 : i32
    scf.if %9 {
      %c0_14 = arith.constant 0 : index
      %c0_15 = arith.constant 0 : index
      %c0_16 = arith.constant 0 : index
      %c0_17 = arith.constant 0 : index
      %10 = vector.load %arg4[%c0_14, %c0_15, %c0_16, %c0_17] : memref<1x3x2x128xf32, #tpu.memory_space<vmem>>, vector<1x3x2x128xf32>
      %cst = arith.constant dense<0.000000e+00> : vector<1x3x2xf32>
      %11 = vector.multi_reduction <add>, %10, %cst [3] : vector<1x3x2x128xf32> to vector<1x3x2xf32>
      %12 = vector.shape_cast %11 : vector<1x3x2xf32> to vector<1x3x2x1xf32>
      %cst_18 = arith.constant dense<0.000000e+00> : vector<1x3x1xf32>
      %13 = vector.multi_reduction <add>, %12, %cst_18 [2] : vector<1x3x2x1xf32> to vector<1x3x1xf32>
      %14 = vector.shape_cast %13 : vector<1x3x1xf32> to vector<1x3x1x1xf32>
      %c0_19 = arith.constant 0 : index
      %c0_20 = arith.constant 0 : index
      %c0_21 = arith.constant 0 : index
      %c0_22 = arith.constant 0 : index
      %15 = vector.load %arg3[%c0_19, %c0_20, %c0_21, %c0_22] : memref<1x3x1x1xf32, #tpu.memory_space<vmem>>, vector<1x3x1x1xf32>
      tpu.vector_store %arg3[%c0_19, %c0_20, %c0_21, %c0_22], %14 {strides = array<i32>} : memref<1x3x1x1xf32, #tpu.memory_space<vmem>>, vector<1x3x1x1xf32>,
    } else {
    }
    return
  }
  func.func @transform_0(%arg0: i32, %arg1: i32) -> (i32, i32, i32, i32) {
    %c0_i32 = arith.constant 0 : i32
    %c0_i32_0 = arith.constant 0 : i32
    %c0_i32_1 = arith.constant 0 : i32
    return %arg0, %c0_i32, %arg1, %c0_i32_0 : i32, i32, i32, i32
  }
  func.func @transform_1(%arg0: i32, %arg1: i32) -> (i32, i32, i32, i32) {
    %c0_i32 = arith.constant 0 : i32
    %c0_i32_0 = arith.constant 0 : i32
    %c0_i32_1 = arith.constant 0 : i32
    %c0_i32_2 = arith.constant 0 : i32
    return %arg0, %c0_i32, %c0_i32_0, %c0_i32_1 : i32, i32, i32, i32
  }
}

</mosaic_0001>

<llo_original>
// kernel: tpu_custom_call.1
$region0: #{tpu_custom_call.1}
  #allocation0 [shape = 'u32[]', space=smem, size = 0x4, offset = 0x4, fixed_abs, tag = 'smem constant byte address 0x4 - core index']
  #allocation1 [shape = 'u32[144,128]{1,0:T(1,128)}', space=vmem, size = 0x12000, scoped, tag = 'internal scratch']
  #allocation2 [shape = 'f32[1,3,2,128]{3,2,1,0:T(2,128)}', space=vmem, size = 0xc00, scoped, tag = 'scratch operand']
  %s0 = inlined_call_operand.hbm [shape: f32[2,3,2,128], index: 0, kind: input, shape index: {}]
  %s1 = inlined_call_operand.vmem [shape: f32[2,3,1,1], index: 1, kind: output, shape index: {}]
  %s2 = sld [smem:[#allocation0]]
  $region49: #{tpu_custom_call.1} parent=0
    _
  %s4 = ssub.s32 1, %s2
  %s5 = scalar_select 0, %s4, %s2
  $region1: #{tpu_custom_call.1} parent=0
    #allocation3 [shape = 'u8[6144]{0}', space=vmem, size = 0x1800, scoped, tag = 'input window, operand 0']
    #allocation4 [shape = 's32[2]{0}', space=sflag, size = 0x8, scoped, tag = 'scoped memory for tpu_custom_call.1']
    %6 = vsyncpa [#allocation4], 0
    %s7 = scalar_lea.sflag [#allocation4], 1
    %8 = vsyncpa %s7, 0
    loop: start=0, step=1, limit=4
    $region2: #{tpu_custom_call.1} parent=1 // loop_pre_header
      _
    $region3: #{tpu_custom_call.1} parent=1 // loop_header
      %s10 = sphi 0, %s14
      %p11 = scmp.ge.s32.totalorder %s10, 4
      %s17 = sphi 0, %s29
      %s18 = sphi 0, %s25
      %s19 = sphi 0, %s17
      %s20 = sphi 0, %s18
      %s21 = sphi 0, %s19
      %s22 = sphi 0, %s20
      %s34 = sphi 0, %s36
      %s37 = sphi 0, %s34
      %s38 = sphi 0, %s37
      %s54 = sphi 0, %s38
      %s60 = sphi 0, %s62
      %s63 = sphi 0, %s60
      %s64 = sphi 0, %s63
      %s80 = sphi 0, %s64
    $region4: #{tpu_custom_call.1} parent=1 // loop_header_branch
      %13 = sbr.rel (%p11) target = $region8
    $region5: #{tpu_custom_call.1} parent=1 // loop_body
      %s15 = ssub.s32 %s10, 1
      %s16 = ssub.s32 %s10, 2
      %s23 = sadd.s32 1, %s18
      %p24 = scmp.ge.s32.totalorder %s23, 1
      %s25 = scalar_select %p24, 0, %s23
      %s26 = sadd.s32 1, %s17
      %s27 = scalar_select %p24, %s26, %s17
      %p28 = scmp.ge.s32.totalorder %s27, 2
      %s29 = scalar_select %p28, 0, %s27
      %s30 = ssub.s32 %s17, %s29
      %s31 = ssub.s32 %s18, %s25
      %s32 = sor.u32 %s30, %s31
      %p33 = scmp.eq.s32.totalorder %s32, 0
      %s35 = sadd.s32 %s34, 1
      %s36 = scalar_select %p33, %s34, %s35
      %p39 = pneg %p33
      %p40 = scmp.eq.s32.totalorder %s10, 1
      %p41 = por %p39, %p40
      %p42 = scmp.ne.s32.totalorder %s34, %s37
      %p43 = scmp.eq.s32.totalorder %s10, 0
      %p44 = por %p42, %p43
      %p45 = scmp.ne.s32.totalorder %s34, %s37
      %p46 = scmp.eq.s32.totalorder %s15, 1
      %p47 = por %p45, %p46
      %p48 = scmp.ne.s32.totalorder %s37, %s38
      %p49 = scmp.eq.s32.totalorder %s15, 0
      %p50 = por %p48, %p49
      %p51 = scmp.ne.s32.totalorder %s37, %s38
      %p52 = scmp.eq.s32.totalorder %s16, 1
      %p53 = por %p51, %p52
      %p55 = scmp.ne.s32.totalorder %s38, %s54
      %p56 = scmp.eq.s32.totalorder %s16, 0
      %p57 = por %p55, %p56
      %s58 = ssub.s32 %s17, %s29
      %p59 = scmp.eq.s32.totalorder %s58, 0
      %s61 = sadd.s32 %s60, 1
      %s62 = scalar_select %p59, %s60, %s61
      %p65 = pneg %p59
      %p66 = scmp.eq.s32.totalorder %s10, 1
      %p67 = por %p65, %p66
      %p68 = scmp.ne.s32.totalorder %s60, %s63
      %p69 = scmp.eq.s32.totalorder %s10, 0
      %p70 = por %p68, %p69
      %p71 = scmp.ne.s32.totalorder %s60, %s63
      %p72 = scmp.eq.s32.totalorder %s15, 1
      %p73 = por %p71, %p72
      %p74 = scmp.ne.s32.totalorder %s63, %s64
      %p75 = scmp.eq.s32.totalorder %s15, 0
      %p76 = por %p74, %p75
      %p77 = scmp.ne.s32.totalorder %s63, %s64
      %p78 = scmp.eq.s32.totalorder %s16, 1
      %p79 = por %p77, %p78
      %p81 = scmp.ne.s32.totalorder %s64, %s80
      %p82 = scmp.eq.s32.totalorder %s16, 0
      %p83 = por %p81, %p82
      %p84 = scmp.le.s32.totalorder 1, %s10
      %p85 = scmp.lt.s32.totalorder %s10, 3
      %p86 = pnand %p84, %p85
      %p87 = pneg %p86
      // Predicated region
      $region9: #{tpu_custom_call.1} parent=5 // pred_check
        _
      $region10: #{tpu_custom_call.1} parent=5 // pred_check_branch
        %89 = sbr.rel (%p86) target = $region12
      $region11: #{tpu_custom_call.1} parent=5 // pred_region
        %s90 = ssub.s32 %s10, 1
      $region12: #{tpu_custom_call.1} parent=5 // pred_fallthru
        _
      %p91 = scmp.lt.s32.totalorder %s10, 2
      // Predicated region
      $region13: #{tpu_custom_call.1} parent=5 // pred_check
        %p92 = pneg %p91
      $region14: #{tpu_custom_call.1} parent=5 // pred_check_branch
        %94 = sbr.rel (%p92) target = $region16
      $region15: #{tpu_custom_call.1} parent=5 // pred_region
        // Predicated region
        $region17: #{tpu_custom_call.1} parent=15 // pred_check
          %p95 = pneg %p44
        $region18: #{tpu_custom_call.1} parent=15 // pred_check_branch
          %97 = sbr.rel (%p95) target = $region20
        $region19: #{tpu_custom_call.1} parent=15 // pred_region
          %s98 = sand.u32 %s34, 1
          %s99 = scalar_lea.sflag [#allocation4], %s98
          %s100 = sand.u32 %s34, 1
          %s101 = smul.addr %s100, 6
          %s102 = scalar_lea.vmem [#allocation3], %s101
          %s104 = ssub.s32 96, 96
          %105 = vsyncadd %s99, %s104
          %s106 = smul.addr %s17, 3
          %s107 = sadd.s32 %s18, %s106
          %s108 = smul.addr %s107, 32
          %s109 = scalar_lea.hbm %s0, %s108
          %s110 = sshll.u32 %s102, 4
          %s111 = int_to_ptr.vmem [resolvable:$true] %s110
          %116 = dma.hbm_to_vmem [thread:$0]  %s109, 96, %s111, %s99, 32, 32, 2
        $region20: #{tpu_custom_call.1} parent=15 // pred_fallthru
          _
      $region16: #{tpu_custom_call.1} parent=5 // pred_fallthru
        _
      %p117 = scmp.le.s32.totalorder 1, %s10
      %p118 = scmp.lt.s32.totalorder %s10, 3
      %p119 = pnand %p117, %p118
      %p120 = pneg %p119
      // Predicated region
      $region21: #{tpu_custom_call.1} parent=5 // pred_check
        _
      $region22: #{tpu_custom_call.1} parent=5 // pred_check_branch
        %122 = sbr.rel (%p119) target = $region24
      $region23: #{tpu_custom_call.1} parent=5 // pred_region
        %s123 = ssub.s32 %s10, 1
        %s124 = sand.u32 %s37, 1
        %s125 = scalar_lea.sflag [#allocation4], %s124
        %s126 = sand.u32 %s37, 1
        %s127 = smul.addr %s126, 6
        %s128 = scalar_lea.vmem [#allocation3], %s127
        // Predicated region
        $region25: #{tpu_custom_call.1} parent=23 // pred_check
          %p129 = pneg %p50
        $region26: #{tpu_custom_call.1} parent=23 // pred_check_branch
          %131 = sbr.rel (%p129) target = $region28
        $region27: #{tpu_custom_call.1} parent=23 // pred_region
          %132 = dma.done %s125, 96
        $region28: #{tpu_custom_call.1} parent=23 // pred_fallthru
          _
        %s133 = sand.u32 %s37, 1
        %s134 = scalar_lea.sflag [#allocation4], %s133
        %s135 = sand.u32 %s37, 1
        %s136 = smul.addr %s135, 6
        %s137 = scalar_lea.vmem [#allocation3], %s136
        %p138 = pneg %p50
        %p139 = pneg %p47
        %p140 = pneg %p76
        %p141 = pneg %p73
        %p142 = scmp.lt.s32.totalorder %s19, 1
        %s143 = scalar_select %p142, %s19, 1
        %s144 = smul.addr %s143, 3
        %s145 = scalar_lea.vmem %s1, %s144
        %p146 = scmp.lt.s32.totalorder %s19, 1
        %s147 = scalar_select %p146, %s19, 1
        %s148 = smul.addr %s147, 3
        %s149 = scalar_lea.vmem %s1, %s148
        %p150 = scmp.eq.s32.totalorder %s20, 0
        // Predicated region
        $region29: #{tpu_custom_call.1} parent=23 // pred_check
          %p151 = pneg %p150
        $region30: #{tpu_custom_call.1} parent=23 // pred_check_branch
          %153 = sbr.rel (%p151) target = $region32
        $region31: #{tpu_custom_call.1} parent=23 // pred_region
          %154 = vst [vmem:[#allocation2] sm:$0x3] 0.0
          %155 = vst [vmem:[#allocation2 + $0x2] sm:$0x3] 0.0
          %156 = vst [vmem:[#allocation2 + $0x4] sm:$0x3] 0.0
        $region32: #{tpu_custom_call.1} parent=23 // pred_fallthru
          _
        %v157 = vld [vmem:[%s128] sm:$0x3]
        %v158 = vld [vmem:[%s128 + $0x2] sm:$0x3]
        %v159 = vld [vmem:[%s128 + $0x4] sm:$0x3]
        %v160 = vld [vmem:[#allocation2] sm:$0x3]
        %v161 = vld [vmem:[#allocation2 + $0x2] sm:$0x3]
        %v162 = vld [vmem:[#allocation2 + $0x4] sm:$0x3]
        %v163 = vadd.f32 %v160, %v157
        %v164 = vadd.f32 %v161, %v158
        %v165 = vadd.f32 %v162, %v159
        %166 = vst [vmem:[#allocation2] sm:$0x3] %v163
        %167 = vst [vmem:[#allocation2 + $0x2] sm:$0x3] %v164
        %168 = vst [vmem:[#allocation2 + $0x4] sm:$0x3] %v165
        // Predicated region
        $region33: #{tpu_custom_call.1} parent=23 // pred_check
          %p169 = pneg %p150
        $region34: #{tpu_custom_call.1} parent=23 // pred_check_branch
          %171 = sbr.rel (%p169) target = $region36
        $region35: #{tpu_custom_call.1} parent=23 // pred_region
          %v172 = vld [vmem:[#allocation2] sm:$0x3]
          %v173 = vld [vmem:[#allocation2 + $0x2] sm:$0x3]
          %v174 = vld [vmem:[#allocation2 + $0x4] sm:$0x3]
          %vm175 = vcmask 1041408
          %v176 = vsel %vm175, %v172, 0.0
          %177 = vadd.xlane.f32.xlu0 %v176
          %v178 = vpop.xlane.xlu0 %177
          %v179 = vsel %vm175, %v173, 0.0
          %180 = vadd.xlane.f32.xlu0 %v179
          %v181 = vpop.xlane.xlu0 %180
          %v182 = vsel %vm175, %v174, 0.0
          %183 = vadd.xlane.f32.xlu0 %v182
          %v184 = vpop.xlane.xlu0 %183
          %v185 = vsel %vm175, %v178, 0.0
          %v186 = vrot.slane %v185, 4
          %v187 = vadd.f32 %v185, %v186
          %v188 = vrot.slane %v187, 2
          %v189 = vadd.f32 %v187, %v188
          %v190 = vrot.slane %v189, 1
          %v191 = vadd.f32 %v189, %v190
          %v192 = vsel %vm175, %v181, 0.0
          %v193 = vrot.slane %v192, 4
          %v194 = vadd.f32 %v192, %v193
          %v195 = vrot.slane %v194, 2
          %v196 = vadd.f32 %v194, %v195
          %v197 = vrot.slane %v196, 1
          %v198 = vadd.f32 %v196, %v197
          %v199 = vsel %vm175, %v184, 0.0
          %v200 = vrot.slane %v199, 4
          %v201 = vadd.f32 %v199, %v200
          %v202 = vrot.slane %v201, 2
          %v203 = vadd.f32 %v201, %v202
          %v204 = vrot.slane %v203, 1
          %v205 = vadd.f32 %v203, %v204
          %vm206 = vcmask 0
          %207 = vst.msk [vmem:[%s149] sm:$0x1] %vm206, %v191
          %208 = vst.msk [vmem:[%s149 + $0x1] sm:$0x1] %vm206, %v198
          %209 = vst.msk [vmem:[%s149 + $0x2] sm:$0x1] %vm206, %v205
        $region36: #{tpu_custom_call.1} parent=23 // pred_fallthru
          _
        %p210 = scmp.lt.s32.totalorder %s19, 1
        %s211 = scalar_select %p210, %s19, 1
        %s212 = smul.addr %s211, 3
        %s213 = scalar_lea.vmem %s1, %s212
        // Predicated region
        $region37: #{tpu_custom_call.1} parent=23 // pred_check
          %p214 = pneg %p73
        $region38: #{tpu_custom_call.1} parent=23 // pred_check_branch
          %216 = sbr.rel (%p214) target = $region40
        $region39: #{tpu_custom_call.1} parent=23 // pred_region
          _
        $region40: #{tpu_custom_call.1} parent=23 // pred_fallthru
          _
      $region24: #{tpu_custom_call.1} parent=5 // pred_fallthru
        _
      %p217 = scmp.le.s32.totalorder 2, %s10
      // Predicated region
      $region41: #{tpu_custom_call.1} parent=5 // pred_check
        %p218 = pneg %p217
      $region42: #{tpu_custom_call.1} parent=5 // pred_check_branch
        %220 = sbr.rel (%p218) target = $region44
      $region43: #{tpu_custom_call.1} parent=5 // pred_region
        %s221 = ssub.s32 %s10, 2
        // Predicated region
        $region45: #{tpu_custom_call.1} parent=43 // pred_check
          %p222 = pneg %p79
        $region46: #{tpu_custom_call.1} parent=43 // pred_check_branch
          %224 = sbr.rel (%p222) target = $region48
        $region47: #{tpu_custom_call.1} parent=43 // pred_region
          %p225 = scmp.lt.s32.totalorder %s21, 1
          %s226 = scalar_select %p225, %s21, 1
          %s227 = smul.addr %s226, 3
          %s228 = scalar_lea.vmem %s1, %s227
        $region48: #{tpu_custom_call.1} parent=43 // pred_fallthru
          _
      $region44: #{tpu_custom_call.1} parent=5 // pred_fallthru
        _
    $region6: #{tpu_custom_call.1} parent=1 // loop_footer
      %s14 = sadd.s32 1, %s10
    $region7: #{tpu_custom_call.1} parent=1 // loop_footer_branch
      %9 = sbr.rel target = $region3
    $region8: #{tpu_custom_call.1} parent=1 // loop_exit
      _
    %229 = vsyncpa [#allocation4], 1
    %s230 = scalar_lea.sflag [#allocation4], 1
    %231 = vsyncpa %s230, 1

</llo_original>
